<compile_context>
chip_gen: v6e
topology: v6e:2x2x1
jax: 0.10.0
libtpu: 0.0.40
codegen_flags: <defaults>
</compile_context>

<pallas_src>
import functools

import numpy as np
import jax
import jax.numpy as jnp
from jax import lax
from jax.experimental import pallas as pl
from jax.experimental.pallas import tpu as pltpu

# ------------- static configuration (mirrors Project2D3Dv2.__init__) -------------
VOXEL_SIZE = 0.6
SCENE_SIZE = (int(4.8 / VOXEL_SIZE), int(2.88 / VOXEL_SIZE), int(4.8 / VOXEL_SIZE))  # (8, 4, 8)
SX, SY, SZ = SCENE_SIZE
DOWNSAMPLE = 40
IMG_W = 640
IMG_H = 480
FEAT_H = IMG_H // DOWNSAMPLE          # 12
FEAT_W = IMG_W // DOWNSAMPLE          # 16
HW = FEAT_H * FEAT_W                  # 192  (matmul K dim; no padding)
C = 4                                 # feature channels
N_VOX = SX * SY * SZ                  # 256  (lane dim of the output block)
N_PAR = 24                            # 12 (inv_cam_pose[:3,:]) + 9 (cam_k) + 3 (vox_origin)

# shifts/masks for in-kernel voxel-coordinate synthesis (scene dims are powers of two)
assert (SY * SZ) & (SY * SZ - 1) == 0 and SZ & (SZ - 1) == 0 and SY & (SY - 1) == 0
SHIFT_X = int(np.log2(SY * SZ))       # 5
SHIFT_Y = int(np.log2(SZ))            # 3
MASK_Y = SY - 1
MASK_Z = SZ - 1


def create_voxel_grid(scene_size):
    # TODO(synk): create_voxel_grid source not provided; assume lexicographic
    # (x slowest, z fastest) integer grid, the common xmuda/SSC convention.
    sx, sy, sz = scene_size
    gx, gy, gz = np.meshgrid(np.arange(sx), np.arange(sy), np.arange(sz), indexing="ij")
    return np.stack([gx, gy, gz], axis=-1).reshape(-1, 3).astype(np.float32)


# ------------------------------- Pallas kernel -----------------------------------
def _project_kernel(par_ref, src_ref, out_ref, *, fliplr):
    # par_ref (SMEM, (B, 24) f32): per-sample raw camera parameters
    #   [ 0:12) inv_cam_pose rows 0..2 (row-major 3x4)   world -> camera
    #   [12:21) cam_k          (row-major 3x3)           camera -> pixels
    #   [21:24) vox_origin
    # src_ref (VMEM, (C, HW)), out_ref (VMEM, (C, N_VOX)) — current batch sample.
    b = pl.program_id(0)
    g = lambda k: par_ref[b, k]          # SMEM scalar load

    # Synthesize integer voxel coords from the linear voxel index (lanes).
    idx = lax.broadcasted_iota(jnp.int32, (1, N_VOX), 1)
    vgx = (idx >> SHIFT_X).astype(jnp.float32)
    vgy = ((idx >> SHIFT_Y) & MASK_Y).astype(jnp.float32)
    vgz = (idx & MASK_Z).astype(jnp.float32)

    # Voxel centers in world coords (incl. the module's y<->z swap of the grid axes).
    half = 0.5 * VOXEL_SIZE
    wx = VOXEL_SIZE * vgx + half + g(21)
    wy = VOXEL_SIZE * vgz + half + g(22)
    wz = VOXEL_SIZE * vgy + half + g(23)

    # world -> camera (rows 0..2 of inv_cam_pose); cz is the z>0 keep test.
    cx = g(0) * wx + g(1) * wy + g(2) * wz + g(3)
    cy = g(4) * wx + g(5) * wy + g(6) * wz + g(7)
    cz = g(8) * wx + g(9) * wy + g(10) * wz + g(11)

    # camera -> homogeneous pixel coords (cam_k).
    uh = g(12) * cx + g(13) * cy + g(14) * cz
    vh = g(15) * cx + g(16) * cy + g(17) * cz
    wh = g(18) * cx + g(19) * cy + g(20) * cz

    den = jnp.where(wh != 0.0, wh, 1.0)
    inv = 1.0 / den                       # one exact divide, reused for u and v
    u = jnp.round(uh * inv)
    v = jnp.round(vh * inv)

    # keep_idx (cam z > 0) combined with select_points_in_frustum(0, 0, W, H)
    valid = (cz > 0.0) & (u >= 0.0) & (u < IMG_W) & (v >= 0.0) & (v < IMG_H)

    if fliplr:  # static python bool (closed over)
        u = (IMG_W - 1.0) - u

    # torch: fliplr(pts_img) gives (row=v, col=u); flat = (v // ds) * w + (u // ds)
    ds = jnp.float32(DOWNSAMPLE)
    flat_img = (jnp.floor(v / ds) * FEAT_W + jnp.floor(u / ds)).astype(jnp.int32)
    flat_img = jnp.where(valid, flat_img, -1)        # invalid -> never matches iota

    # scatter-as-gather: voxel indices are unique, so scatter_(dim=1) is equivalent to
    # a per-voxel gather; invalid voxels keep the zero of x3d.  flat_img ∈ [-1, HW),
    # so only HW one-hot rows are needed.
    pix = lax.broadcasted_iota(jnp.int32, (HW, N_VOX), 0)
    onehot = (pix == flat_img).astype(jnp.float32)   # (HW, N_VOX) = (192, 256)

    out_ref[...] = jnp.dot(src_ref[...], onehot, preferred_element_type=jnp.float32)


@functools.partial(jax.jit, static_argnames=("fliplr",))
def _project_batched(x2d, inv_cam_pose, vox_origin, cam_k, *, fliplr):
    bsz, c, h, w = x2d.shape
    assert (h, w) == (FEAT_H, FEAT_W) and c == C

    src = x2d.reshape(bsz, c, h * w).astype(jnp.float32)                  # (B, C, HW)
    params = jnp.concatenate(
        [inv_cam_pose.astype(jnp.float32)[:, :3, :].reshape(bsz, 12),
         cam_k.astype(jnp.float32).reshape(bsz, 9),
         vox_origin.astype(jnp.float32).reshape(bsz, 3)], axis=-1)        # (B, 24)

    kernel = functools.partial(_project_kernel, fliplr=bool(fliplr))
    x3d_flat = pl.pallas_call(
        kernel,
        grid=(bsz,),
        out_shape=jax.ShapeDtypeStruct((bsz, c, N_VOX), jnp.float32),
        in_specs=[
            # raw per-sample camera params: whole array resident in SMEM
            pl.BlockSpec(memory_space=pltpu.MemorySpace.SMEM),
            # per-sample feature slab (C, HW), pipelined over the batch grid
            pl.BlockSpec((None, c, h * w), lambda b: (b, 0, 0)),
        ],
        out_specs=pl.BlockSpec((None, c, N_VOX), lambda b: (b, 0, 0)),
        compiler_params=pltpu.CompilerParams(dimension_semantics=("parallel",)),
        cost_estimate=pl.CostEstimate(
            flops=2 * bsz * c * h * w * N_VOX,
            transcendentals=0,
            bytes_accessed=4 * bsz * (N_PAR + c * h * w + c * N_VOX)),
    )(params, src)
    return x3d_flat.reshape(bsz, c, SX, SY, SZ)


def project_2d3d_v2(x2d, inv_cam_pose, vox_origin, cam_k,
                    old_voxel_indices=None, old_image_indices=None, fliplr=False):
    """Matches Project2D3Dv2.forward; also accepts a leading batch dim on all inputs."""
    del old_voxel_indices, old_image_indices   # accepted but unused (as in torch forward)
    single = (x2d.ndim == 3)
    if single:
        x2d = x2d[None]
        inv_cam_pose = jnp.reshape(inv_cam_pose, (1, 4, 4))
        cam_k = jnp.reshape(cam_k, (1, 3, 3))
        vox_origin = jnp.reshape(vox_origin, (1, 3))
    out = _project_batched(x2d, inv_cam_pose, vox_origin, cam_k, fliplr=bool(fliplr))
    return out[0] if single else out


# --------------------- pure-numpy reference (float64 geometry) --------------------
def _reference(x2d, inv_cam_pose, vox_origin, cam_k, fliplr):
    c, h, w = x2d.shape
    src = np.asarray(x2d, np.float64).reshape(c, -1)
    vg = create_voxel_grid(SCENE_SIZE).astype(np.float64)
    pts2 = 0.5 * VOXEL_SIZE + VOXEL_SIZE * vg
    pts_world = np.stack([pts2[:, 0], pts2[:, 2], pts2[:, 1]], axis=1)
    pts_world = pts_world + np.asarray(vox_origin, np.float64).reshape(1, 3)
    homo = np.concatenate([pts_world, np.ones((pts_world.shape[0], 1))], axis=1)
    cam = (np.asarray(inv_cam_pose, np.float64) @ homo.T).T
    keep = cam[:, 2] > 0
    cam, vgk = cam[keep], vg[keep]
    img = (np.asarray(cam_k, np.float64) @ cam[:, :3].T).T
    uv = np.round(img[:, :2] / img[:, 2:3])
    keep2 = (uv[:, 0] >= 0) & (uv[:, 0] < IMG_W) & (uv[:, 1] >= 0) & (uv[:, 1] < IMG_H)
    img_idx = uv[keep2][:, ::-1].copy()     # torch.fliplr -> (row=v, col=u)
    vox_idx = vgk[keep2]
    if fliplr:
        img_idx[:, 1] = IMG_W - 1 - img_idx[:, 1]
    img_idx = np.floor_divide(img_idx, DOWNSAMPLE)
    flat_img = (img_idx[:, 0] * w + img_idx[:, 1]).astype(np.int64)
    feat = src[:, flat_img]
    flat_vox = (vox_idx[:, 0] * (SY * SZ) + vox_idx[:, 1] * SZ + vox_idx[:, 2]).astype(np.int64)
    x3d = np.zeros((c, N_VOX), np.float64)
    x3d[:, flat_vox] = feat
    return x3d.reshape(c, SX, SY, SZ).astype(np.float32)


if __name__ == "__main__":
    key = jax.random.PRNGKey(0)
    B = 2
    x2d = jax.random.normal(key, (B, C, FEAT_H, FEAT_W), dtype=jnp.float32)

    # deterministic camera setups: cameras inside the scene, looking along world +y
    inv_cam_pose = jnp.stack([
        jnp.array([[1.0, 0.0, 0.0, -2.4],
                   [0.0, 0.0, -1.0, 1.44],
                   [0.0, 1.0, 0.0, 0.5],
                   [0.0, 0.0, 0.0, 1.0]], dtype=jnp.float32),
        jnp.array([[1.0, 0.0, 0.0, -2.4],
                   [0.0, 0.0, -1.0, 1.44],
                   [0.0, 1.0, 0.0, 0.9],
                   [0.0, 0.0, 0.0, 1.0]], dtype=jnp.float32),
    ])
    cam_k = jnp.tile(jnp.array([[320.0, 0.0, 320.0],
                                [0.0, 320.0, 240.0],
                                [0.0, 0.0, 1.0]], dtype=jnp.float32)[None], (B, 1, 1))
    vox_origin = jnp.stack([jnp.zeros((3,), jnp.float32),
                            jnp.array([0.6, 0.0, -0.6], jnp.float32)])
    fliplr = True

    out = project_2d3d_v2(x2d, inv_cam_pose, vox_origin, cam_k, None, None, fliplr)
    out = jax.block_until_ready(out)
    assert out.shape == (B, C, SX, SY, SZ)

    for b in range(B):
        ref = _reference(np.asarray(x2d[b]), np.asarray(inv_cam_pose[b]),
                         np.asarray(vox_origin[b]), np.asarray(cam_k[b]), fliplr)
        np.testing.assert_allclose(np.asarray(out[b]), ref, rtol=1e-5, atol=1e-5)

    # also exercise the single-sample (torch-style) call path
    out1 = project_2d3d_v2(x2d[0], inv_cam_pose[0], vox_origin[0], cam_k[0], None, None, fliplr)
    out1 = jax.block_until_ready(out1)
    assert out1.shape == (C, SX, SY, SZ)
    np.testing.assert_allclose(np.asarray(out1), np.asarray(out[0]), rtol=1e-6, atol=1e-6)

    print("KERNEL_OK")
</pallas_src>

<mosaic_0001>
module attributes {stable_mosaic.version = 11 : i64} {
  func.func @_project_kernel(%arg0: i32, %arg1: memref<2x24xf32, #tpu.memory_space<smem>>, %arg2: memref<1x4x192xf32, #tpu.memory_space<vmem>>, %arg3: memref<1x4x256xf32, #tpu.memory_space<vmem>>) attributes {dimension_semantics = [#tpu.dimension_semantics<parallel>], iteration_bounds = array<i64: 2>, scalar_prefetch = 0 : i64, scratch_operands = 0 : i64, tpu.core_type = #tpu.core_type<tc>, window_params = [{transform_indices = @transform_0, window_bounds = array<i64: 2, 24>}, {transform_indices = @transform_1, window_bounds = array<i64: 1, 4, 192>}, {transform_indices = @transform_2, window_bounds = array<i64: 1, 4, 256>}]} {
    %0 = tpu.iota {dimensions = array<i32: 1>} : vector<1x256xi32>
    %c5_i32 = arith.constant 5 : i32
    %1 = vector.broadcast %c5_i32 : i32 to vector<1x256xi32>
    %2 = arith.shrsi %0, %1 : vector<1x256xi32>
    %3 = arith.sitofp %2 : vector<1x256xi32> to vector<1x256xf32>
    %c3_i32 = arith.constant 3 : i32
    %4 = vector.broadcast %c3_i32 : i32 to vector<1x256xi32>
    %5 = arith.shrsi %0, %4 : vector<1x256xi32>
    %c3_i32_0 = arith.constant 3 : i32
    %6 = vector.broadcast %c3_i32_0 : i32 to vector<1x256xi32>
    %7 = arith.andi %5, %6 : vector<1x256xi32>
    %8 = arith.sitofp %7 : vector<1x256xi32> to vector<1x256xf32>
    %c7_i32 = arith.constant 7 : i32
    %9 = vector.broadcast %c7_i32 : i32 to vector<1x256xi32>
    %10 = arith.andi %0, %9 : vector<1x256xi32>
    %11 = arith.sitofp %10 : vector<1x256xi32> to vector<1x256xf32>
    %cst = arith.constant 6.000000e-01 : f32
    %12 = vector.broadcast %cst : f32 to vector<1x256xf32>
    %13 = arith.mulf %12, %3 : vector<1x256xf32>
    %cst_1 = arith.constant 3.000000e-01 : f32
    %14 = vector.broadcast %cst_1 : f32 to vector<1x256xf32>
    %15 = arith.addf %13, %14 : vector<1x256xf32>
    %16 = arith.index_cast %arg0 : i32 to index
    %c21 = arith.constant 21 : index
    %17 = memref.load %arg1[%16, %c21] : memref<2x24xf32, #tpu.memory_space<smem>>
    %18 = vector.broadcast %17 : f32 to vector<1x256xf32>
    %19 = arith.addf %15, %18 : vector<1x256xf32>
    %cst_2 = arith.constant 6.000000e-01 : f32
    %20 = vector.broadcast %cst_2 : f32 to vector<1x256xf32>
    %21 = arith.mulf %20, %11 : vector<1x256xf32>
    %cst_3 = arith.constant 3.000000e-01 : f32
    %22 = vector.broadcast %cst_3 : f32 to vector<1x256xf32>
    %23 = arith.addf %21, %22 : vector<1x256xf32>
    %24 = arith.index_cast %arg0 : i32 to index
    %c22 = arith.constant 22 : index
    %25 = memref.load %arg1[%24, %c22] : memref<2x24xf32, #tpu.memory_space<smem>>
    %26 = vector.broadcast %25 : f32 to vector<1x256xf32>
    %27 = arith.addf %23, %26 : vector<1x256xf32>
    %cst_4 = arith.constant 6.000000e-01 : f32
    %28 = vector.broadcast %cst_4 : f32 to vector<1x256xf32>
    %29 = arith.mulf %28, %8 : vector<1x256xf32>
    %cst_5 = arith.constant 3.000000e-01 : f32
    %30 = vector.broadcast %cst_5 : f32 to vector<1x256xf32>
    %31 = arith.addf %29, %30 : vector<1x256xf32>
    %32 = arith.index_cast %arg0 : i32 to index
    %c23 = arith.constant 23 : index
    %33 = memref.load %arg1[%32, %c23] : memref<2x24xf32, #tpu.memory_space<smem>>
    %34 = vector.broadcast %33 : f32 to vector<1x256xf32>
    %35 = arith.addf %31, %34 : vector<1x256xf32>
    %36 = arith.index_cast %arg0 : i32 to index
    %c0 = arith.constant 0 : index
    %37 = memref.load %arg1[%36, %c0] : memref<2x24xf32, #tpu.memory_space<smem>>
    %38 = vector.broadcast %37 : f32 to vector<1x256xf32>
    %39 = arith.mulf %38, %19 : vector<1x256xf32>
    %40 = arith.index_cast %arg0 : i32 to index
    %c1 = arith.constant 1 : index
    %41 = memref.load %arg1[%40, %c1] : memref<2x24xf32, #tpu.memory_space<smem>>
    %42 = vector.broadcast %41 : f32 to vector<1x256xf32>
    %43 = arith.mulf %42, %27 : vector<1x256xf32>
    %44 = arith.addf %39, %43 : vector<1x256xf32>
    %45 = arith.index_cast %arg0 : i32 to index
    %c2 = arith.constant 2 : index
    %46 = memref.load %arg1[%45, %c2] : memref<2x24xf32, #tpu.memory_space<smem>>
    %47 = vector.broadcast %46 : f32 to vector<1x256xf32>
    %48 = arith.mulf %47, %35 : vector<1x256xf32>
    %49 = arith.addf %44, %48 : vector<1x256xf32>
    %50 = arith.index_cast %arg0 : i32 to index
    %c3 = arith.constant 3 : index
    %51 = memref.load %arg1[%50, %c3] : memref<2x24xf32, #tpu.memory_space<smem>>
    %52 = vector.broadcast %51 : f32 to vector<1x256xf32>
    %53 = arith.addf %49, %52 : vector<1x256xf32>
    %54 = arith.index_cast %arg0 : i32 to index
    %c4 = arith.constant 4 : index
    %55 = memref.load %arg1[%54, %c4] : memref<2x24xf32, #tpu.memory_space<smem>>
    %56 = vector.broadcast %55 : f32 to vector<1x256xf32>
    %57 = arith.mulf %56, %19 : vector<1x256xf32>
    %58 = arith.index_cast %arg0 : i32 to index
    %c5 = arith.constant 5 : index
    %59 = memref.load %arg1[%58, %c5] : memref<2x24xf32, #tpu.memory_space<smem>>
    %60 = vector.broadcast %59 : f32 to vector<1x256xf32>
    %61 = arith.mulf %60, %27 : vector<1x256xf32>
    %62 = arith.addf %57, %61 : vector<1x256xf32>
    %63 = arith.index_cast %arg0 : i32 to index
    %c6 = arith.constant 6 : index
    %64 = memref.load %arg1[%63, %c6] : memref<2x24xf32, #tpu.memory_space<smem>>
    %65 = vector.broadcast %64 : f32 to vector<1x256xf32>
    %66 = arith.mulf %65, %35 : vector<1x256xf32>
    %67 = arith.addf %62, %66 : vector<1x256xf32>
    %68 = arith.index_cast %arg0 : i32 to index
    %c7 = arith.constant 7 : index
    %69 = memref.load %arg1[%68, %c7] : memref<2x24xf32, #tpu.memory_space<smem>>
    %70 = vector.broadcast %69 : f32 to vector<1x256xf32>
    %71 = arith.addf %67, %70 : vector<1x256xf32>
    %72 = arith.index_cast %arg0 : i32 to index
    %c8 = arith.constant 8 : index
    %73 = memref.load %arg1[%72, %c8] : memref<2x24xf32, #tpu.memory_space<smem>>
    %74 = vector.broadcast %73 : f32 to vector<1x256xf32>
    %75 = arith.mulf %74, %19 : vector<1x256xf32>
    %76 = arith.index_cast %arg0 : i32 to index
    %c9 = arith.constant 9 : index
    %77 = memref.load %arg1[%76, %c9] : memref<2x24xf32, #tpu.memory_space<smem>>
    %78 = vector.broadcast %77 : f32 to vector<1x256xf32>
    %79 = arith.mulf %78, %27 : vector<1x256xf32>
    %80 = arith.addf %75, %79 : vector<1x256xf32>
    %81 = arith.index_cast %arg0 : i32 to index
    %c10 = arith.constant 10 : index
    %82 = memref.load %arg1[%81, %c10] : memref<2x24xf32, #tpu.memory_space<smem>>
    %83 = vector.broadcast %82 : f32 to vector<1x256xf32>
    %84 = arith.mulf %83, %35 : vector<1x256xf32>
    %85 = arith.addf %80, %84 : vector<1x256xf32>
    %86 = arith.index_cast %arg0 : i32 to index
    %c11 = arith.constant 11 : index
    %87 = memref.load %arg1[%86, %c11] : memref<2x24xf32, #tpu.memory_space<smem>>
    %88 = vector.broadcast %87 : f32 to vector<1x256xf32>
    %89 = arith.addf %85, %88 : vector<1x256xf32>
    %90 = arith.index_cast %arg0 : i32 to index
    %c12 = arith.constant 12 : index
    %91 = memref.load %arg1[%90, %c12] : memref<2x24xf32, #tpu.memory_space<smem>>
    %92 = vector.broadcast %91 : f32 to vector<1x256xf32>
    %93 = arith.mulf %92, %53 : vector<1x256xf32>
    %94 = arith.index_cast %arg0 : i32 to index
    %c13 = arith.constant 13 : index
    %95 = memref.load %arg1[%94, %c13] : memref<2x24xf32, #tpu.memory_space<smem>>
    %96 = vector.broadcast %95 : f32 to vector<1x256xf32>
    %97 = arith.mulf %96, %71 : vector<1x256xf32>
    %98 = arith.addf %93, %97 : vector<1x256xf32>
    %99 = arith.index_cast %arg0 : i32 to index
    %c14 = arith.constant 14 : index
    %100 = memref.load %arg1[%99, %c14] : memref<2x24xf32, #tpu.memory_space<smem>>
    %101 = vector.broadcast %100 : f32 to vector<1x256xf32>
    %102 = arith.mulf %101, %89 : vector<1x256xf32>
    %103 = arith.addf %98, %102 : vector<1x256xf32>
    %104 = arith.index_cast %arg0 : i32 to index
    %c15 = arith.constant 15 : index
    %105 = memref.load %arg1[%104, %c15] : memref<2x24xf32, #tpu.memory_space<smem>>
    %106 = vector.broadcast %105 : f32 to vector<1x256xf32>
    %107 = arith.mulf %106, %53 : vector<1x256xf32>
    %108 = arith.index_cast %arg0 : i32 to index
    %c16 = arith.constant 16 : index
    %109 = memref.load %arg1[%108, %c16] : memref<2x24xf32, #tpu.memory_space<smem>>
    %110 = vector.broadcast %109 : f32 to vector<1x256xf32>
    %111 = arith.mulf %110, %71 : vector<1x256xf32>
    %112 = arith.addf %107, %111 : vector<1x256xf32>
    %113 = arith.index_cast %arg0 : i32 to index
    %c17 = arith.constant 17 : index
    %114 = memref.load %arg1[%113, %c17] : memref<2x24xf32, #tpu.memory_space<smem>>
    %115 = vector.broadcast %114 : f32 to vector<1x256xf32>
    %116 = arith.mulf %115, %89 : vector<1x256xf32>
    %117 = arith.addf %112, %116 : vector<1x256xf32>
    %118 = arith.index_cast %arg0 : i32 to index
    %c18 = arith.constant 18 : index
    %119 = memref.load %arg1[%118, %c18] : memref<2x24xf32, #tpu.memory_space<smem>>
    %120 = vector.broadcast %119 : f32 to vector<1x256xf32>
    %121 = arith.mulf %120, %53 : vector<1x256xf32>
    %122 = arith.index_cast %arg0 : i32 to index
    %c19 = arith.constant 19 : index
    %123 = memref.load %arg1[%122, %c19] : memref<2x24xf32, #tpu.memory_space<smem>>
    %124 = vector.broadcast %123 : f32 to vector<1x256xf32>
    %125 = arith.mulf %124, %71 : vector<1x256xf32>
    %126 = arith.addf %121, %125 : vector<1x256xf32>
    %127 = arith.index_cast %arg0 : i32 to index
    %c20 = arith.constant 20 : index
    %128 = memref.load %arg1[%127, %c20] : memref<2x24xf32, #tpu.memory_space<smem>>
    %129 = vector.broadcast %128 : f32 to vector<1x256xf32>
    %130 = arith.mulf %129, %89 : vector<1x256xf32>
    %131 = arith.addf %126, %130 : vector<1x256xf32>
    %cst_6 = arith.constant 0.000000e+00 : f32
    %132 = vector.broadcast %cst_6 : f32 to vector<1x256xf32>
    %133 = arith.cmpf one, %131, %132 : vector<1x256xf32>
    %cst_7 = arith.constant 1.000000e+00 : f32
    %134 = vector.broadcast %cst_7 : f32 to vector<1x256xf32>
    %135 = arith.select %133, %131, %134 : vector<1x256xi1>, vector<1x256xf32>
    %cst_8 = arith.constant 1.000000e+00 : f32
    %136 = vector.broadcast %cst_8 : f32 to vector<1x256xf32>
    %137 = arith.divf %136, %135 : vector<1x256xf32>
    %138 = arith.mulf %103, %137 : vector<1x256xf32>
    %139 = math.roundeven %138 : vector<1x256xf32>
    %140 = arith.mulf %117, %137 : vector<1x256xf32>
    %141 = math.roundeven %140 : vector<1x256xf32>
    %cst_9 = arith.constant 0.000000e+00 : f32
    %142 = vector.broadcast %cst_9 : f32 to vector<1x256xf32>
    %143 = arith.cmpf ogt, %89, %142 : vector<1x256xf32>
    %cst_10 = arith.constant 0.000000e+00 : f32
    %144 = vector.broadcast %cst_10 : f32 to vector<1x256xf32>
    %145 = arith.cmpf oge, %139, %144 : vector<1x256xf32>
    %146 = arith.andi %143, %145 : vector<1x256xi1>
    %cst_11 = arith.constant 6.400000e+02 : f32
    %147 = vector.broadcast %cst_11 : f32 to vector<1x256xf32>
    %148 = arith.cmpf olt, %139, %147 : vector<1x256xf32>
    %149 = arith.andi %146, %148 : vector<1x256xi1>
    %cst_12 = arith.constant 0.000000e+00 : f32
    %150 = vector.broadcast %cst_12 : f32 to vector<1x256xf32>
    %151 = arith.cmpf oge, %141, %150 : vector<1x256xf32>
    %152 = arith.andi %149, %151 : vector<1x256xi1>
    %cst_13 = arith.constant 4.800000e+02 : f32
    %153 = vector.broadcast %cst_13 : f32 to vector<1x256xf32>
    %154 = arith.cmpf olt, %141, %153 : vector<1x256xf32>
    %155 = arith.andi %152, %154 : vector<1x256xi1>
    %cst_14 = arith.constant 6.390000e+02 : f32
    %156 = vector.broadcast %cst_14 : f32 to vector<1x256xf32>
    %157 = arith.subf %156, %139 : vector<1x256xf32>
    %cst_15 = arith.constant 4.000000e+01 : f32
    %158 = vector.broadcast %cst_15 : f32 to vector<1x256xf32>
    %159 = arith.divf %141, %158 : vector<1x256xf32>
    %160 = math.floor %159 : vector<1x256xf32>
    %cst_16 = arith.constant 1.600000e+01 : f32
    %161 = vector.broadcast %cst_16 : f32 to vector<1x256xf32>
    %162 = arith.mulf %160, %161 : vector<1x256xf32>
    %cst_17 = arith.constant 4.000000e+01 : f32
    %163 = vector.broadcast %cst_17 : f32 to vector<1x256xf32>
    %164 = arith.divf %157, %163 : vector<1x256xf32>
    %165 = math.floor %164 : vector<1x256xf32>
    %166 = arith.addf %162, %165 : vector<1x256xf32>
    %167 = arith.fptosi %166 : vector<1x256xf32> to vector<1x256xi32>
    %c-1_i32 = arith.constant -1 : i32
    %168 = vector.broadcast %c-1_i32 : i32 to vector<1x256xi32>
    %169 = arith.select %155, %167, %168 : vector<1x256xi1>, vector<1x256xi32>
    %170 = tpu.iota {dimensions = array<i32: 0>} : vector<192x256xi32>
    %171 = vector.broadcast %169 : vector<1x256xi32> to vector<192x256xi32>
    %172 = arith.cmpi eq, %170, %171 : vector<192x256xi32>
    %173 = arith.extui %172 : vector<192x256xi1> to vector<192x256xi32>
    %174 = arith.sitofp %173 : vector<192x256xi32> to vector<192x256xf32>
    %c0_18 = arith.constant 0 : index
    %c0_19 = arith.constant 0 : index
    %c0_20 = arith.constant 0 : index
    %175 = vector.load %arg2[%c0_18, %c0_19, %c0_20] : memref<1x4x192xf32, #tpu.memory_space<vmem>>, vector<1x4x192xf32>
    %176 = vector.shape_cast %175 : vector<1x4x192xf32> to vector<4x192xf32>
    %cst_21 = arith.constant dense<0.000000e+00> : vector<4x256xf32>
    %177 = tpu.matmul %176, %174, %cst_21 {dimension_numbers = #tpu.dot_dimension_numbers<[1], [0], [0], [1], [0, 0, 1, 1], [], []>} : vector<4x192xf32>, vector<192x256xf32>, vector<4x256xf32> -> vector<4x256xf32>
    %c0_22 = arith.constant 0 : index
    %c0_23 = arith.constant 0 : index
    %c0_24 = arith.constant 0 : index
    %178 = vector.load %arg3[%c0_22, %c0_23, %c0_24] : memref<1x4x256xf32, #tpu.memory_space<vmem>>, vector<1x4x256xf32>
    %179 = vector.shape_cast %178 : vector<1x4x256xf32> to vector<4x256xf32>
    %180 = vector.shape_cast %177 : vector<4x256xf32> to vector<1x4x256xf32>
    tpu.vector_store %arg3[%c0_22, %c0_23, %c0_24], %180 {strides = array<i32>} : memref<1x4x256xf32, #tpu.memory_space<vmem>>, vector<1x4x256xf32>,
    return
  }
  func.func @transform_0(%arg0: i32) -> (i32, i32) {
    %c0_i32 = arith.constant 0 : i32
    %c0_i32_0 = arith.constant 0 : i32
    %c0_i32_1 = arith.constant 0 : i32
    return %c0_i32, %c0_i32_0 : i32, i32
  }
  func.func @transform_1(%arg0: i32) -> (i32, i32, i32) {
    %c0_i32 = arith.constant 0 : i32
    %c0_i32_0 = arith.constant 0 : i32
    %c0_i32_1 = arith.constant 0 : i32
    return %arg0, %c0_i32, %c0_i32_0 : i32, i32, i32
  }
  func.func @transform_2(%arg0: i32) -> (i32, i32, i32) {
    %c0_i32 = arith.constant 0 : i32
    %c0_i32_0 = arith.constant 0 : i32
    %c0_i32_1 = arith.constant 0 : i32
    return %arg0, %c0_i32, %c0_i32_0 : i32, i32, i32
  }
}

</mosaic_0001>

<llo_original>
// kernel: _project_batched.1
$region0: #{_project_batched.1}
  #allocation0 [shape = 'u32[]', space=smem, size = 0x4, offset = 0x4, fixed_abs, tag = 'smem constant byte address 0x4 - core index']
  #allocation1 [shape = 'u32[144,128]{1,0:T(1,128)}', space=vmem, size = 0x12000, scoped, tag = 'internal scratch']
  %s0 = inlined_call_operand.vmem [shape: f32[2,24], index: 0, kind: input, shape index: {}]
  %s1 = inlined_call_operand.vmem [shape: f32[2,4,192], index: 1, kind: input, shape index: {}]
  %s2 = inlined_call_operand.vmem [shape: f32[2,4,256], index: 2, kind: output, shape index: {}]
  %s3 = sld [smem:[#allocation0]]
  $region45: #{_project_batched.1} parent=0
    _
  %s5 = ssub.s32 1, %s3
  %s6 = scalar_select 0, %s5, %s3
  $region1: #{_project_batched.1} parent=0
    #allocation2 [shape = 'u8[1024]{0}', space=smem, size = 0x400, scoped, tag = 'input window, operand 0, single buffered']
    #allocation3 [shape = 's32[2]{0}', space=sflag, size = 0x8, scoped, tag = 'scoped memory for _project_batched.1']
    %7 = vsyncpa [#allocation3], 0
    loop: start=0, step=1, limit=4
    $region2: #{_project_batched.1} parent=1 // loop_pre_header
      _
    $region3: #{_project_batched.1} parent=1 // loop_header
      %s9 = sphi 0, %s13
      %p10 = scmp.ge.s32.totalorder %s9, 4
      %s17 = sphi 0, %s17
      %s19 = sphi 0, %s17
      %s20 = sphi 0, %s19
      %s34 = sphi 0, %s20
      %s40 = sphi 0, %s42
      %s43 = sphi 0, %s40
      %s44 = sphi 0, %s43
      %s60 = sphi 0, %s44
      %s66 = sphi 0, %s68
      %s69 = sphi 0, %s66
      %s70 = sphi 0, %s69
      %s86 = sphi 0, %s70
    $region4: #{_project_batched.1} parent=1 // loop_header_branch
      %12 = sbr.rel (%p10) target = $region8
    $region5: #{_project_batched.1} parent=1 // loop_body
      %s14 = ssub.s32 %s9, 1
      %s15 = ssub.s32 %s9, 2
      %s16 = sadd.s32 %s9, 1
      %s18 = sadd.s32 %s17, 1
      %p21 = scmp.eq.s32.totalorder %s9, 1
      %p22 = scmp.ne.s32.totalorder %s17, %s19
      %p23 = scmp.eq.s32.totalorder %s9, 0
      %p24 = por %p22, %p23
      %p25 = scmp.ne.s32.totalorder %s17, %s19
      %p26 = scmp.eq.s32.totalorder %s14, 1
      %p27 = por %p25, %p26
      %p28 = scmp.ne.s32.totalorder %s19, %s20
      %p29 = scmp.eq.s32.totalorder %s14, 0
      %p30 = por %p28, %p29
      %p31 = scmp.ne.s32.totalorder %s19, %s20
      %p32 = scmp.eq.s32.totalorder %s15, 1
      %p33 = por %p31, %p32
      %p35 = scmp.ne.s32.totalorder %s20, %s34
      %p36 = scmp.eq.s32.totalorder %s15, 0
      %p37 = por %p35, %p36
      %s38 = ssub.s32 %s9, %s16
      %p39 = scmp.eq.s32.totalorder %s38, 0
      %s41 = sadd.s32 %s40, 1
      %s42 = scalar_select %p39, %s40, %s41
      %p45 = pneg %p39
      %p46 = scmp.eq.s32.totalorder %s9, 1
      %p47 = por %p45, %p46
      %p48 = scmp.ne.s32.totalorder %s40, %s43
      %p49 = scmp.eq.s32.totalorder %s9, 0
      %p50 = por %p48, %p49
      %p51 = scmp.ne.s32.totalorder %s40, %s43
      %p52 = scmp.eq.s32.totalorder %s14, 1
      %p53 = por %p51, %p52
      %p54 = scmp.ne.s32.totalorder %s43, %s44
      %p55 = scmp.eq.s32.totalorder %s14, 0
      %p56 = por %p54, %p55
      %p57 = scmp.ne.s32.totalorder %s43, %s44
      %p58 = scmp.eq.s32.totalorder %s15, 1
      %p59 = por %p57, %p58
      %p61 = scmp.ne.s32.totalorder %s44, %s60
      %p62 = scmp.eq.s32.totalorder %s15, 0
      %p63 = por %p61, %p62
      %s64 = ssub.s32 %s9, %s16
      %p65 = scmp.eq.s32.totalorder %s64, 0
      %s67 = sadd.s32 %s66, 1
      %s68 = scalar_select %p65, %s66, %s67
      %p71 = pneg %p65
      %p72 = scmp.eq.s32.totalorder %s9, 1
      %p73 = por %p71, %p72
      %p74 = scmp.ne.s32.totalorder %s66, %s69
      %p75 = scmp.eq.s32.totalorder %s9, 0
      %p76 = por %p74, %p75
      %p77 = scmp.ne.s32.totalorder %s66, %s69
      %p78 = scmp.eq.s32.totalorder %s14, 1
      %p79 = por %p77, %p78
      %p80 = scmp.ne.s32.totalorder %s69, %s70
      %p81 = scmp.eq.s32.totalorder %s14, 0
      %p82 = por %p80, %p81
      %p83 = scmp.ne.s32.totalorder %s69, %s70
      %p84 = scmp.eq.s32.totalorder %s15, 1
      %p85 = por %p83, %p84
      %p87 = scmp.ne.s32.totalorder %s70, %s86
      %p88 = scmp.eq.s32.totalorder %s15, 0
      %p89 = por %p87, %p88
      %p90 = scmp.le.s32.totalorder 1, %s9
      %p91 = scmp.lt.s32.totalorder %s9, 3
      %p92 = pnand %p90, %p91
      %p93 = pneg %p92
      // Predicated region
      $region9: #{_project_batched.1} parent=5 // pred_check
        _
      $region10: #{_project_batched.1} parent=5 // pred_check_branch
        %95 = sbr.rel (%p92) target = $region12
      $region11: #{_project_batched.1} parent=5 // pred_region
        %s96 = ssub.s32 %s9, 1
        // Predicated region
        $region13: #{_project_batched.1} parent=11 // pred_check
          %p97 = pneg %p30
        $region14: #{_project_batched.1} parent=11 // pred_check_branch
          %99 = sbr.rel (%p97) target = $region16
        $region15: #{_project_batched.1} parent=11 // pred_region
          %s101 = ssub.s32 32, 32
          %102 = vsyncadd [#allocation3], %s101
          %s104 = sshll.u32 %s0, 4
          %s105 = int_to_ptr.vmem [resolvable:$true] %s104
          %107 = dma.vmem_to_smem %s105, 32, [#allocation2], [#allocation3]
        $region16: #{_project_batched.1} parent=11 // pred_fallthru
          _
      $region12: #{_project_batched.1} parent=5 // pred_fallthru
        _
      %p108 = scmp.lt.s32.totalorder %s9, 2
      // Predicated region
      $region17: #{_project_batched.1} parent=5 // pred_check
        %p109 = pneg %p108
      $region18: #{_project_batched.1} parent=5 // pred_check_branch
        %111 = sbr.rel (%p109) target = $region20
      $region19: #{_project_batched.1} parent=5 // pred_region
        // Predicated region
        $region21: #{_project_batched.1} parent=19 // pred_check
          %p112 = pneg %p50
        $region22: #{_project_batched.1} parent=19 // pred_check_branch
          %114 = sbr.rel (%p112) target = $region24
        $region23: #{_project_batched.1} parent=19 // pred_region
          %p115 = scmp.lt.s32.totalorder %s9, 1
          %s116 = scalar_select %p115, %s9, 1
          %s117 = smul.addr %s116, 2
          %s118 = smul.addr %s117, 4
          %s119 = scalar_lea.vmem %s1, %s118
        $region24: #{_project_batched.1} parent=19 // pred_fallthru
          _
      $region20: #{_project_batched.1} parent=5 // pred_fallthru
        _
      %p120 = scmp.le.s32.totalorder 1, %s9
      %p121 = scmp.lt.s32.totalorder %s9, 3
      %p122 = pnand %p120, %p121
      %p123 = pneg %p122
      // Predicated region
      $region25: #{_project_batched.1} parent=5 // pred_check
        _
      $region26: #{_project_batched.1} parent=5 // pred_check_branch
        %125 = sbr.rel (%p122) target = $region28
      $region27: #{_project_batched.1} parent=5 // pred_region
        %s126 = ssub.s32 %s9, 1
        // Predicated region
        $region29: #{_project_batched.1} parent=27 // pred_check
          %p127 = pneg %p30
        $region30: #{_project_batched.1} parent=27 // pred_check_branch
          %129 = sbr.rel (%p127) target = $region32
        $region31: #{_project_batched.1} parent=27 // pred_region
          %130 = dma.done [#allocation3], 32
        $region32: #{_project_batched.1} parent=27 // pred_fallthru
          _
        %131 = sfence
        %p132 = pneg %p30
        %p133 = pneg %p27
        %p134 = scmp.lt.s32.totalorder %s14, 1
        %s135 = scalar_select %p134, %s14, 1
        %s136 = smul.addr %s135, 2
        %s137 = smul.addr %s136, 4
        %s138 = scalar_lea.vmem %s1, %s137
        %p139 = pneg %p56
        %p140 = pneg %p53
        %p141 = pneg %p82
        %p142 = pneg %p79
        %p143 = scmp.lt.s32.totalorder %s14, 1
        %s144 = scalar_select %p143, %s14, 1
        %s145 = smul.addr %s144, 2
        %s146 = smul.addr %s145, 4
        %s147 = scalar_lea.vmem %s2, %s146
        %p148 = scmp.lt.s32.totalorder %s14, 1
        %s149 = scalar_select %p148, %s14, 1
        %s150 = smul.addr %s149, 2
        %s151 = smul.addr %s150, 4
        %s152 = scalar_lea.vmem %s1, %s151
        %p153 = scmp.lt.s32.totalorder %s14, 1
        %s154 = scalar_select %p153, %s14, 1
        %s155 = smul.addr %s154, 2
        %s156 = smul.addr %s155, 4
        %s157 = scalar_lea.vmem %s2, %s156
        %v158 = vlaneseq
        %v159 = vand.u32 %v158, 127
        %v160 = vadd.s32 %v159, 128
        %v161 = vshra.s32 %v159, 5
        %v162 = vshra.s32 %v160, 5
        %v163 = vcvt.s32.f32 %v161
        %v164 = vcvt.s32.f32 %v162
        %v165 = vshra.s32 %v159, 3
        %v166 = vshra.s32 %v160, 3
        %v167 = vand.u32 %v165, 3
        %v168 = vand.u32 %v166, 3
        %v169 = vcvt.s32.f32 %v167
        %v170 = vcvt.s32.f32 %v168
        %v171 = vand.u32 %v159, 7
        %v172 = vand.u32 %v160, 7
        %v173 = vcvt.s32.f32 %v171
        %v174 = vcvt.s32.f32 %v172
        %v175 = vmul.f32 %v163, 0.6
        %v176 = vmul.f32 %v164, 0.6
        %v177 = vadd.f32 %v175, 0.3
        %v178 = vadd.f32 %v176, 0.3
        %s179 = smul.u32 %s14, 128
        %s180 = sadd.s32 %s179, 21
        %s181 = sld [smem:[#allocation2 + %s180]]
        %v182 = vstv %s181
        %v183 = vadd.f32 %v177, %v182
        %v184 = vadd.f32 %v178, %v182
        %v185 = vmul.f32 %v173, 0.6
        %v186 = vmul.f32 %v174, 0.6
        %v187 = vadd.f32 %v185, 0.3
        %v188 = vadd.f32 %v186, 0.3
        %s189 = sadd.s32 %s179, 22
        %s190 = sld [smem:[#allocation2 + %s189]]
        %v191 = vstv %s190
        %v192 = vadd.f32 %v187, %v191
        %v193 = vadd.f32 %v188, %v191
        %v194 = vmul.f32 %v169, 0.6
        %v195 = vmul.f32 %v170, 0.6
        %v196 = vadd.f32 %v194, 0.3
        %v197 = vadd.f32 %v195, 0.3
        %s198 = sadd.s32 %s179, 23
        %s199 = sld [smem:[#allocation2 + %s198]]
        %v200 = vstv %s199
        %v201 = vadd.f32 %v196, %v200
        %v202 = vadd.f32 %v197, %v200
        %s203 = sld [smem:[#allocation2 + %s179]]
        %v204 = vstv %s203
        %v205 = vmul.f32 %v204, %v183
        %v206 = vmul.f32 %v204, %v184
        %s207 = sadd.s32 %s179, 1
        %s208 = sld [smem:[#allocation2 + %s207]]
        %v209 = vstv %s208
        %v210 = vmul.f32 %v209, %v192
        %v211 = vmul.f32 %v209, %v193
        %v212 = vadd.f32 %v205, %v210
        %v213 = vadd.f32 %v206, %v211
        %s214 = sadd.s32 %s179, 2
        %s215 = sld [smem:[#allocation2 + %s214]]
        %v216 = vstv %s215
        %v217 = vmul.f32 %v216, %v201
        %v218 = vmul.f32 %v216, %v202
        %v219 = vadd.f32 %v212, %v217
        %v220 = vadd.f32 %v213, %v218
        %s221 = sadd.s32 %s179, 3
        %s222 = sld [smem:[#allocation2 + %s221]]
        %v223 = vstv %s222
        %v224 = vadd.f32 %v219, %v223
        %v225 = vadd.f32 %v220, %v223
        %s226 = sadd.s32 %s179, 4
        %s227 = sld [smem:[#allocation2 + %s226]]
        %v228 = vstv %s227
        %v229 = vmul.f32 %v228, %v183
        %v230 = vmul.f32 %v228, %v184
        %s231 = sadd.s32 %s179, 5
        %s232 = sld [smem:[#allocation2 + %s231]]
        %v233 = vstv %s232
        %v234 = vmul.f32 %v233, %v192
        %v235 = vmul.f32 %v233, %v193
        %v236 = vadd.f32 %v229, %v234
        %v237 = vadd.f32 %v230, %v235
        %s238 = sadd.s32 %s179, 6
        %s239 = sld [smem:[#allocation2 + %s238]]
        %v240 = vstv %s239
        %v241 = vmul.f32 %v240, %v201
        %v242 = vmul.f32 %v240, %v202
        %v243 = vadd.f32 %v236, %v241
        %v244 = vadd.f32 %v237, %v242
        %s245 = sadd.s32 %s179, 7
        %s246 = sld [smem:[#allocation2 + %s245]]
        %v247 = vstv %s246
        %v248 = vadd.f32 %v243, %v247
        %v249 = vadd.f32 %v244, %v247
        %s250 = sadd.s32 %s179, 8
        %s251 = sld [smem:[#allocation2 + %s250]]
        %v252 = vstv %s251
        %v253 = vmul.f32 %v252, %v183
        %v254 = vmul.f32 %v252, %v184
        %s255 = sadd.s32 %s179, 9
        %s256 = sld [smem:[#allocation2 + %s255]]
        %v257 = vstv %s256
        %v258 = vmul.f32 %v257, %v192
        %v259 = vmul.f32 %v257, %v193
        %v260 = vadd.f32 %v253, %v258
        %v261 = vadd.f32 %v254, %v259
        %s262 = sadd.s32 %s179, 10
        %s263 = sld [smem:[#allocation2 + %s262]]
        %v264 = vstv %s263
        %v265 = vmul.f32 %v264, %v201
        %v266 = vmul.f32 %v264, %v202
        %v267 = vadd.f32 %v260, %v265
        %v268 = vadd.f32 %v261, %v266
        %s269 = sadd.s32 %s179, 11
        %s270 = sld [smem:[#allocation2 + %s269]]
        %v271 = vstv %s270
        %v272 = vadd.f32 %v267, %v271
        %v273 = vadd.f32 %v268, %v271
        %s274 = sadd.s32 %s179, 12
        %s275 = sld [smem:[#allocation2 + %s274]]
        %v276 = vstv %s275
        %v277 = vmul.f32 %v276, %v224
        %v278 = vmul.f32 %v276, %v225
        %s279 = sadd.s32 %s179, 13
        %s280 = sld [smem:[#allocation2 + %s279]]
        %v281 = vstv %s280
        %v282 = vmul.f32 %v281, %v248
        %v283 = vmul.f32 %v281, %v249
        %v284 = vadd.f32 %v277, %v282
        %v285 = vadd.f32 %v278, %v283
        %s286 = sadd.s32 %s179, 14
        %s287 = sld [smem:[#allocation2 + %s286]]
        %v288 = vstv %s287
        %v289 = vmul.f32 %v288, %v272
        %v290 = vmul.f32 %v288, %v273
        %v291 = vadd.f32 %v284, %v289
        %v292 = vadd.f32 %v285, %v290
        %s293 = sadd.s32 %s179, 15
        %s294 = sld [smem:[#allocation2 + %s293]]
        %v295 = vstv %s294
        %v296 = vmul.f32 %v295, %v224
        %v297 = vmul.f32 %v295, %v225
        %s298 = sadd.s32 %s179, 16
        %s299 = sld [smem:[#allocation2 + %s298]]
        %v300 = vstv %s299
        %v301 = vmul.f32 %v300, %v248
        %v302 = vmul.f32 %v300, %v249
        %v303 = vadd.f32 %v296, %v301
        %v304 = vadd.f32 %v297, %v302
        %s305 = sadd.s32 %s179, 17
        %s306 = sld [smem:[#allocation2 + %s305]]
        %v307 = vstv %s306
        %v308 = vmul.f32 %v307, %v272
        %v309 = vmul.f32 %v307, %v273
        %v310 = vadd.f32 %v303, %v308
        %v311 = vadd.f32 %v304, %v309
        %s312 = sadd.s32 %s179, 18
        %s313 = sld [smem:[#allocation2 + %s312]]
        %v314 = vstv %s313
        %v315 = vmul.f32 %v314, %v224
        %v316 = vmul.f32 %v314, %v225
        %s317 = sadd.s32 %s179, 19
        %s318 = sld [smem:[#allocation2 + %s317]]
        %v319 = vstv %s318
        %v320 = vmul.f32 %v319, %v248
        %v321 = vmul.f32 %v319, %v249
        %v322 = vadd.f32 %v315, %v320
        %v323 = vadd.f32 %v316, %v321
        %s324 = sadd.s32 %s179, 20
        %s325 = sld [smem:[#allocation2 + %s324]]
        %v326 = vstv %s325
        %v327 = vmul.f32 %v326, %v272
        %v328 = vmul.f32 %v326, %v273
        %v329 = vadd.f32 %v322, %v327
        %v330 = vadd.f32 %v323, %v328
        %vm331 = vcmp.ne.f32.partialorder %v329, 0.0
        %vm332 = vcmp.ne.f32.partialorder %v330, 0.0
        %v333 = vsel %vm331, %v329, 1.0
        %v334 = vsel %vm332, %v330, 1.0
        %v335 = vrcp.pop %v333
        %v336 = vmul.f32 1.0, %v335
        %v337 = vrcp.pop %v334
        %v338 = vmul.f32 1.0, %v337
        %v339 = vmul.f32 %v291, %v336
        %v340 = vmul.f32 %v292, %v338
        %v341 = vround.ne.pseudo %v339
        %v342 = vround.ne.pseudo %v340
        %v343 = vmul.f32 %v310, %v336
        %v344 = vmul.f32 %v311, %v338
        %v345 = vround.ne.pseudo %v343
        %v346 = vround.ne.pseudo %v344
        %vm347 = vcmp.gt.f32.partialorder %v272, 0.0
        %vm348 = vcmp.gt.f32.partialorder %v273, 0.0
        %vm349 = vcmp.ge.f32.partialorder %v341, 0.0
        %vm350 = vcmp.ge.f32.partialorder %v342, 0.0
        %vm351 = vmand %vm347, %vm349
        %vm352 = vmand %vm348, %vm350
        %vm353 = vcmp.lt.f32.partialorder %v341, 640.0
        %vm354 = vcmp.lt.f32.partialorder %v342, 640.0
        %vm355 = vmand %vm351, %vm353
        %vm356 = vmand %vm352, %vm354
        %vm357 = vcmp.ge.f32.partialorder %v345, 0.0
        %vm358 = vcmp.ge.f32.partialorder %v346, 0.0
        %vm359 = vmand %vm355, %vm357
        %vm360 = vmand %vm356, %vm358
        %vm361 = vcmp.lt.f32.partialorder %v345, 480.0
        %vm362 = vcmp.lt.f32.partialorder %v346, 480.0
        %vm363 = vmand %vm359, %vm361
        %vm364 = vmand %vm360, %vm362
        %v365 = vsub.f32 639.0, %v341
        %v366 = vsub.f32 639.0, %v342
        %v367 = vrcp.pop 40.0
        %v368 = vmul.f32 %v345, %v367
        %v369 = vmul.f32 %v346, %v367
        %v370 = vfloor.f32 %v368
        %v371 = vfloor.f32 %v369
        %v372 = vmul.f32 %v370, 16.0
        %v373 = vmul.f32 %v371, 16.0
        %v374 = vmul.f32 %v365, %v367
        %v375 = vmul.f32 %v366, %v367
        %v376 = vfloor.f32 %v374
        %v377 = vfloor.f32 %v375
        %v378 = vadd.f32 %v372, %v376
        %v379 = vadd.f32 %v373, %v377
        %v380 = vcvt.f32.s32.to.zero.pseudo %v378
        %v381 = vcvt.f32.s32.to.zero.pseudo %v379
        %v382 = vsel %vm363, %v380, 4294967295
        %v383 = vsel %vm364, %v381, 4294967295
        %v384 = vlaneseq
        %v385 = vshrl.u32 %v384, 7
        %v386 = vadd.s32 %v385, 8
        %v387 = vadd.s32 %v385, 16
        %v388 = vadd.s32 %v385, 24
        %v389 = vadd.s32 %v385, 32
        %v390 = vadd.s32 %v385, 40
        %v391 = vadd.s32 %v385, 48
        %v392 = vadd.s32 %v385, 56
        %v393 = vadd.s32 %v385, 64
        %v394 = vadd.s32 %v385, 72
        %v395 = vadd.s32 %v385, 80
        %v396 = vadd.s32 %v385, 88
        %v397 = vadd.s32 %v385, 96
        %v398 = vadd.s32 %v385, 104
        %v399 = vadd.s32 %v385, 112
        %v400 = vadd.s32 %v385, 120
        %v401 = vadd.s32 %v385, 128
        %v402 = vadd.s32 %v385, 136
        %v403 = vadd.s32 %v385, 144
        %v404 = vadd.s32 %v385, 152
        %v405 = vadd.s32 %v385, 160
        %v406 = vadd.s32 %v385, 168
        %v407 = vadd.s32 %v385, 176
        %v408 = vadd.s32 %v385, 184
        %vm409 = vcmp.eq.s32.totalorder %v385, %v382
        %vm410 = vcmp.eq.s32.totalorder %v385, %v383
        %vm411 = vcmp.eq.s32.totalorder %v386, %v382
        %vm412 = vcmp.eq.s32.totalorder %v386, %v383
        %vm413 = vcmp.eq.s32.totalorder %v387, %v382
        %vm414 = vcmp.eq.s32.totalorder %v387, %v383
        %vm415 = vcmp.eq.s32.totalorder %v388, %v382
        %vm416 = vcmp.eq.s32.totalorder %v388, %v383
        %vm417 = vcmp.eq.s32.totalorder %v389, %v382
        %vm418 = vcmp.eq.s32.totalorder %v389, %v383
        %vm419 = vcmp.eq.s32.totalorder %v390, %v382
        %vm420 = vcmp.eq.s32.totalorder %v390, %v383
        %vm421 = vcmp.eq.s32.totalorder %v391, %v382
        %vm422 = vcmp.eq.s32.totalorder %v391, %v383
        %vm423 = vcmp.eq.s32.totalorder %v392, %v382
        %vm424 = vcmp.eq.s32.totalorder %v392, %v383
        %vm425 = vcmp.eq.s32.totalorder %v393, %v382
        %vm426 = vcmp.eq.s32.totalorder %v393, %v383
        %vm427 = vcmp.eq.s32.totalorder %v394, %v382
        %vm428 = vcmp.eq.s32.totalorder %v394, %v383
        %vm429 = vcmp.eq.s32.totalorder %v395, %v382
        %vm430 = vcmp.eq.s32.totalorder %v395, %v383
        %vm431 = vcmp.eq.s32.totalorder %v396, %v382
        %vm432 = vcmp.eq.s32.totalorder %v396, %v383
        %vm433 = vcmp.eq.s32.totalorder %v397, %v382
        %vm434 = vcmp.eq.s32.totalorder %v397, %v383
        %vm435 = vcmp.eq.s32.totalorder %v398, %v382
        %vm436 = vcmp.eq.s32.totalorder %v398, %v383
        %vm437 = vcmp.eq.s32.totalorder %v399, %v382
        %vm438 = vcmp.eq.s32.totalorder %v399, %v383
        %vm439 = vcmp.eq.s32.totalorder %v400, %v382
        %vm440 = vcmp.eq.s32.totalorder %v400, %v383
        %vm441 = vcmp.eq.s32.totalorder %v401, %v382
        %vm442 = vcmp.eq.s32.totalorder %v401, %v383
        %vm443 = vcmp.eq.s32.totalorder %v402, %v382
        %vm444 = vcmp.eq.s32.totalorder %v402, %v383
        %vm445 = vcmp.eq.s32.totalorder %v403, %v382
        %vm446 = vcmp.eq.s32.totalorder %v403, %v383
        %vm447 = vcmp.eq.s32.totalorder %v404, %v382
        %vm448 = vcmp.eq.s32.totalorder %v404, %v383
        %vm449 = vcmp.eq.s32.totalorder %v405, %v382
        %vm450 = vcmp.eq.s32.totalorder %v405, %v383
        %vm451 = vcmp.eq.s32.totalorder %v406, %v382
        %vm452 = vcmp.eq.s32.totalorder %v406, %v383
        %vm453 = vcmp.eq.s32.totalorder %v407, %v382
        %vm454 = vcmp.eq.s32.totalorder %v407, %v383
        %vm455 = vcmp.eq.s32.totalorder %v408, %v382
        %vm456 = vcmp.eq.s32.totalorder %v408, %v383
        %v457 = vsel %vm409, 1, 0
        %v458 = vsel %vm410, 1, 0
        %v459 = vsel %vm411, 1, 0
        %v460 = vsel %vm412, 1, 0
        %v461 = vsel %vm413, 1, 0
        %v462 = vsel %vm414, 1, 0
        %v463 = vsel %vm415, 1, 0
        %v464 = vsel %vm416, 1, 0
        %v465 = vsel %vm417, 1, 0
        %v466 = vsel %vm418, 1, 0
        %v467 = vsel %vm419, 1, 0
        %v468 = vsel %vm420, 1, 0
        %v469 = vsel %vm421, 1, 0
        %v470 = vsel %vm422, 1, 0
        %v471 = vsel %vm423, 1, 0
        %v472 = vsel %vm424, 1, 0
        %v473 = vsel %vm425, 1, 0
        %v474 = vsel %vm426, 1, 0
        %v475 = vsel %vm427, 1, 0
        %v476 = vsel %vm428, 1, 0
        %v477 = vsel %vm429, 1, 0
        %v478 = vsel %vm430, 1, 0
        %v479 = vsel %vm431, 1, 0
        %v480 = vsel %vm432, 1, 0
        %v481 = vsel %vm433, 1, 0
        %v482 = vsel %vm434, 1, 0
        %v483 = vsel %vm435, 1, 0
        %v484 = vsel %vm436, 1, 0
        %v485 = vsel %vm437, 1, 0
        %v486 = vsel %vm438, 1, 0
        %v487 = vsel %vm439, 1, 0
        %v488 = vsel %vm440, 1, 0
        %v489 = vsel %vm441, 1, 0
        %v490 = vsel %vm442, 1, 0
        %v491 = vsel %vm443, 1, 0
        %v492 = vsel %vm444, 1, 0
        %v493 = vsel %vm445, 1, 0
        %v494 = vsel %vm446, 1, 0
        %v495 = vsel %vm447, 1, 0
        %v496 = vsel %vm448, 1, 0
        %v497 = vsel %vm449, 1, 0
        %v498 = vsel %vm450, 1, 0
        %v499 = vsel %vm451, 1, 0
        %v500 = vsel %vm452, 1, 0
        %v501 = vsel %vm453, 1, 0
        %v502 = vsel %vm454, 1, 0
        %v503 = vsel %vm455, 1, 0
        %v504 = vsel %vm456, 1, 0
        %v505 = vcvt.s32.f32 %v457
        %v506 = vcvt.s32.f32 %v458
        %v507 = vcvt.s32.f32 %v459
        %v508 = vcvt.s32.f32 %v460
        %v509 = vcvt.s32.f32 %v461
        %v510 = vcvt.s32.f32 %v462
        %v511 = vcvt.s32.f32 %v463
        %v512 = vcvt.s32.f32 %v464
        %v513 = vcvt.s32.f32 %v465
        %v514 = vcvt.s32.f32 %v466
        %v515 = vcvt.s32.f32 %v467
        %v516 = vcvt.s32.f32 %v468
        %v517 = vcvt.s32.f32 %v469
        %v518 = vcvt.s32.f32 %v470
        %v519 = vcvt.s32.f32 %v471
        %v520 = vcvt.s32.f32 %v472
        %v521 = vcvt.s32.f32 %v473
        %v522 = vcvt.s32.f32 %v474
        %v523 = vcvt.s32.f32 %v475
        %v524 = vcvt.s32.f32 %v476
        %v525 = vcvt.s32.f32 %v477
        %v526 = vcvt.s32.f32 %v478
        %v527 = vcvt.s32.f32 %v479
        %v528 = vcvt.s32.f32 %v480
        %v529 = vcvt.s32.f32 %v481
        %v530 = vcvt.s32.f32 %v482
        %v531 = vcvt.s32.f32 %v483
        %v532 = vcvt.s32.f32 %v484
        %v533 = vcvt.s32.f32 %v485
        %v534 = vcvt.s32.f32 %v486
        %v535 = vcvt.s32.f32 %v487
        %v536 = vcvt.s32.f32 %v488
        %v537 = vcvt.s32.f32 %v489
        %v538 = vcvt.s32.f32 %v490
        %v539 = vcvt.s32.f32 %v491
        %v540 = vcvt.s32.f32 %v492
        %v541 = vcvt.s32.f32 %v493
        %v542 = vcvt.s32.f32 %v494
        %v543 = vcvt.s32.f32 %v495
        %v544 = vcvt.s32.f32 %v496
        %v545 = vcvt.s32.f32 %v497
        %v546 = vcvt.s32.f32 %v498
        %v547 = vcvt.s32.f32 %v499
        %v548 = vcvt.s32.f32 %v500
        %v549 = vcvt.s32.f32 %v501
        %v550 = vcvt.s32.f32 %v502
        %v551 = vcvt.s32.f32 %v503
        %v552 = vcvt.s32.f32 %v504
        %v553 = vld [vmem:[%s152] sm:$0xff]
        %v555 = vcombine.high %v553, %v553
        %vm556 = vcmask 523264
        %v557 = vsel %vm556, %v555, 0
        %559 = vmatprep.subr.mxu0 %v536
        %560 = vmatpush1.msra.mxu0 %v535
        %561 = vmatprep.subr.mxu0 %v534
        %562 = vmatpush1.msra.mxu0 %v533
        %563 = vmatprep.subr.mxu0 %v532
        %564 = vmatpush1.msra.mxu0 %v531
        %565 = vmatprep.subr.mxu0 %v530
        %566 = vmatpush1.msra.mxu0 %v529
        %567 = vmatprep.subr.mxu0 %v528
        %568 = vmatpush1.msra.mxu0 %v527
        %569 = vmatprep.subr.mxu0 %v526
        %570 = vmatpush1.msra.mxu0 %v525
        %571 = vmatprep.subr.mxu0 %v524
        %572 = vmatpush1.msra.mxu0 %v523
        %573 = vmatprep.subr.mxu0 %v522
        %574 = vmatpush1.msra.mxu0 %v521
        %575 = vmatprep.subr.mxu0 %v520
        %576 = vmatpush1.msra.mxu0 %v519
        %577 = vmatprep.subr.mxu0 %v518
        %578 = vmatpush1.msra.mxu0 %v517
        %579 = vmatprep.subr.mxu0 %v516
        %580 = vmatpush1.msra.mxu0 %v515
        %581 = vmatprep.subr.mxu0 %v514
        %582 = vmatpush1.msra.mxu0 %v513
        %583 = vmatprep.subr.mxu0 %v512
        %584 = vmatpush1.msra.mxu0 %v511
        %585 = vmatprep.subr.mxu0 %v510
        %586 = vmatpush1.msra.mxu0 %v509
        %587 = vmatprep.subr.mxu0 %v508
        %588 = vmatpush1.msra.mxu0 %v507
        %589 = vmatprep.subr.mxu0 %v506
        %590 = vmatpush1.msra.mxu0 %v505
        %591 = vmatprep.subr.mxu0 0.0
        %592 = vmatpush2.msra.mxu0 0.0
        %593 = vmatprep.subr.mxu0 0.0
        %594 = vmatpush2.msra.mxu0 0.0
        %595 = vmatprep.subr.mxu0 0.0
        %596 = vmatpush2.msra.mxu0 0.0
        %597 = vmatprep.subr.mxu0 0.0
        %598 = vmatpush2.msra.mxu0 0.0
        %599 = vmatprep.subr.mxu0 0.0
        %600 = vmatpush2.msra.mxu0 0.0
        %601 = vmatprep.subr.mxu0 0.0
        %602 = vmatpush2.msra.mxu0 0.0
        %603 = vmatprep.subr.mxu0 0.0
        %604 = vmatpush2.msra.mxu0 0.0
        %605 = vmatprep.subr.mxu0 0.0
        %606 = vmatpush2.msra.mxu0 0.0
        %607 = vmatprep.subr.mxu0 %v552
        %608 = vmatpush2.msra.mxu0 %v551
        %609 = vmatprep.subr.mxu0 %v550
        %610 = vmatpush2.msra.mxu0 %v549
        %611 = vmatprep.subr.mxu0 %v548
        %612 = vmatpush2.msra.mxu0 %v547
        %613 = vmatprep.subr.mxu0 %v546
        %614 = vmatpush2.msra.mxu0 %v545
        %615 = vmatprep.subr.mxu0 %v544
        %616 = vmatpush2.msra.mxu0 %v543
        %617 = vmatprep.subr.mxu0 %v542
        %618 = vmatpush2.msra.mxu0 %v541
        %619 = vmatprep.subr.mxu0 %v540
        %620 = vmatpush2.msra.mxu0 %v539
        %621 = vmatprep.subr.mxu0 %v538
        %622 = vmatpush2.msra.mxu0 %v537
        %623 = vmatprep.mubr.f32.mxu0 %v557
        %624 = vmatmul.mubr.f32.gmra.mxu0 %v553
        %v625 = vpop.f32.mrf.mxu0
        %v626 = vadd.f32 0.0, %v625
        %v627 = vpop.f32.mrf.mxu0
        %v628 = vadd.f32 0.0, %v627
        %629 = vdwg.mxu0
        %v632 = vcombine.low %v626, %v628
        %634 = vst [vmem:[%s157] sm:$0xff] %v632
        %p635 = scmp.lt.s32.totalorder %s14, 1
        %s636 = scalar_select %p635, %s14, 1
        %s637 = smul.addr %s636, 2
        %s638 = smul.addr %s637, 4
        %s639 = scalar_lea.vmem %s2, %s638
        // Predicated region
        $region33: #{_project_batched.1} parent=27 // pred_check
          %p640 = pneg %p79
        $region34: #{_project_batched.1} parent=27 // pred_check_branch
          %642 = sbr.rel (%p640) target = $region36
        $region35: #{_project_batched.1} parent=27 // pred_region
          _
        $region36: #{_project_batched.1} parent=27 // pred_fallthru
          _
      $region28: #{_project_batched.1} parent=5 // pred_fallthru
        _
      %p643 = scmp.le.s32.totalorder 2, %s9
      // Predicated region
      $region37: #{_project_batched.1} parent=5 // pred_check
        %p644 = pneg %p643
      $region38: #{_project_batched.1} parent=5 // pred_check_branch
        %646 = sbr.rel (%p644) target = $region40
      $region39: #{_project_batched.1} parent=5 // pred_region
        %s647 = ssub.s32 %s9, 2
        // Predicated region
        $region41: #{_project_batched.1} parent=39 // pred_check
          %p648 = pneg %p85
        $region42: #{_project_batched.1} parent=39 // pred_check_branch
          %650 = sbr.rel (%p648) target = $region44
        $region43: #{_project_batched.1} parent=39 // pred_region
          %p651 = scmp.lt.s32.totalorder %s15, 1
          %s652 = scalar_select %p651, %s15, 1
          %s653 = smul.addr %s652, 2
          %s654 = smul.addr %s653, 4
          %s655 = scalar_lea.vmem %s2, %s654
        $region44: #{_project_batched.1} parent=39 // pred_fallthru
          _
      $region40: #{_project_batched.1} parent=5 // pred_fallthru
        _
    $region6: #{_project_batched.1} parent=1 // loop_footer
      %s13 = sadd.s32 1, %s9
    $region7: #{_project_batched.1} parent=1 // loop_footer_branch
      %8 = sbr.rel target = $region3
    $region8: #{_project_batched.1} parent=1 // loop_exit
      _
    %656 = vsyncpa [#allocation3], 1
    %s657 = scalar_lea.sflag [#allocation3], 1
    %658 = vsyncpa %s657, 1

</llo_original>
